<compile_context>
chip_gen: v7x
topology: tpu7x:2x2x1
jax: 0.10.0
libtpu: 0.0.40
codegen_flags: <defaults>
</compile_context>

<pallas_src>
import functools

import jax
import jax.numpy as jnp
from jax.experimental import pallas as pl
from jax.experimental.pallas import tpu as pltpu


def add_layernorm_kernel(a_ref, b_ref, gamma_ref, beta_ref, o_ref, *, eps):
    # a_ref, b_ref, o_ref: (block_rows, C); gamma/beta: (1, C)
    a = a_ref[...].astype(jnp.float32)
    b = b_ref[...].astype(jnp.float32)
    x = a + b

    c = x.shape[-1]
    inv_c = jnp.float32(1.0 / c)

    # One-pass statistics: the two cross-lane (XLU) reductions are independent.
    s1 = jnp.sum(x, axis=-1, keepdims=True)
    s2 = jnp.sum(x * x, axis=-1, keepdims=True)
    mean = s1 * inv_c
    var = jnp.maximum(s2 * inv_c - mean * mean, 0.0)  # clamp f32 cancellation
    inv = jax.lax.rsqrt(var + jnp.float32(eps))

    g = gamma_ref[...].astype(jnp.float32)
    bt = beta_ref[...].astype(jnp.float32)
    o_ref[...] = ((x - mean) * inv * g + bt).astype(o_ref.dtype)


def _round_up(x, m):
    return ((x + m - 1) // m) * m


def add_layernorm(x203, x217, gamma, beta, *, eps=1e-5, max_block_rows=512):
    """x203, x217: (B, H, W, C); gamma, beta: (C,). Returns (B, H, W, C)."""
    B, H, W, C = x203.shape
    rows = B * H * W
    out_dtype = x203.dtype

    a = x203.reshape(rows, C)          # free reshape (contiguous)
    b = x217.reshape(rows, C)
    g = gamma.reshape(1, C)
    bt = beta.reshape(1, C)

    # Row-tile selection:
    #  - small problems: at most 2 balanced tiles (v7x megacore balance; on
    #    single-TC v5e/v6e the second step is only ~0.35 us of fixed cost).
    #  - large problems: cap at max_block_rows (1 MiB f32 tiles at C=512).
    if rows <= 8:
        br = 8
    else:
        br = min(max_block_rows, _round_up(pl.cdiv(rows, 2), 8))
    grid = (pl.cdiv(rows, br),)

    out = pl.pallas_call(
        functools.partial(add_layernorm_kernel, eps=eps),
        out_shape=jax.ShapeDtypeStruct((rows, C), out_dtype),
        grid=grid,
        in_specs=[
            pl.BlockSpec((br, C), lambda i: (i, 0)),
            pl.BlockSpec((br, C), lambda i: (i, 0)),
            pl.BlockSpec((1, C), lambda i: (0, 0)),   # gamma: resident in VMEM
            pl.BlockSpec((1, C), lambda i: (0, 0)),   # beta:  resident in VMEM
        ],
        out_specs=pl.BlockSpec((br, C), lambda i: (i, 0)),
        compiler_params=pltpu.CompilerParams(
            dimension_semantics=("parallel",),        # rows independent -> megacore
        ),
    )(a, b, g, bt)

    return out.reshape(B, H, W, C)


if __name__ == "__main__":
    key = jax.random.PRNGKey(0)
    k1, k2 = jax.random.split(key)

    # Shapes implied by the PyTorch module: (1, 14, 14, 512)
    B, H, W, C = 1, 14, 14, 512
    x203 = jax.random.normal(k1, (B, H, W, C), dtype=jnp.float32)
    x217 = jax.random.normal(k2, (B, H, W, C), dtype=jnp.float32)

    # PyTorch LayerNorm default affine init: weight=1, bias=0
    gamma = jnp.ones((C,), dtype=jnp.float32)
    beta = jnp.zeros((C,), dtype=jnp.float32)

    out = add_layernorm(x203, x217, gamma, beta)
    jax.block_until_ready(out)

    # Pure-JAX reference (two-pass, same eps)
    xs = x203 + x217
    mu = jnp.mean(xs, axis=-1, keepdims=True)
    var = jnp.mean((xs - mu) ** 2, axis=-1, keepdims=True)
    ref = (xs - mu) / jnp.sqrt(var + 1e-5) * gamma + beta
    assert out.shape == (B, H, W, C)
    assert jnp.allclose(out, ref, atol=1e-4, rtol=1e-4), "mismatch vs reference"

    print("KERNEL_OK")
</pallas_src>

<mosaic_0001>
module attributes {stable_mosaic.version = 11 : i64} {
  func.func @add_layernorm_kernel(%arg0: i32, %arg1: memref<104x512xf32, #tpu.memory_space<vmem>>, %arg2: memref<104x512xf32, #tpu.memory_space<vmem>>, %arg3: memref<1x512xf32, #tpu.memory_space<vmem>>, %arg4: memref<1x512xf32, #tpu.memory_space<vmem>>, %arg5: memref<104x512xf32, #tpu.memory_space<vmem>>) attributes {dimension_semantics = [#tpu.dimension_semantics<parallel>], iteration_bounds = array<i64: 2>, scalar_prefetch = 0 : i64, scratch_operands = 0 : i64, tpu.core_type = #tpu.core_type<tc>, window_params = [{transform_indices = @transform_0, window_bounds = array<i64: 104, 512>}, {transform_indices = @transform_1, window_bounds = array<i64: 104, 512>}, {pipeline_mode = #tpu.pipeline_mode<synchronous>, transform_indices = @transform_2, window_bounds = array<i64: 1, 512>}, {pipeline_mode = #tpu.pipeline_mode<synchronous>, transform_indices = @transform_3, window_bounds = array<i64: 1, 512>}, {transform_indices = @transform_4, window_bounds = array<i64: 104, 512>}]} {
    %c0 = arith.constant 0 : index
    %c0_0 = arith.constant 0 : index
    %0 = vector.load %arg1[%c0, %c0_0] : memref<104x512xf32, #tpu.memory_space<vmem>>, vector<104x512xf32>
    %c0_1 = arith.constant 0 : index
    %c0_2 = arith.constant 0 : index
    %1 = vector.load %arg2[%c0_1, %c0_2] : memref<104x512xf32, #tpu.memory_space<vmem>>, vector<104x512xf32>
    %2 = arith.addf %0, %1 : vector<104x512xf32>
    %cst = arith.constant dense<0.000000e+00> : vector<104xf32>
    %3 = vector.multi_reduction <add>, %2, %cst [1] : vector<104x512xf32> to vector<104xf32>
    %4 = vector.shape_cast %3 : vector<104xf32> to vector<104x1xf32>
    %5 = arith.mulf %2, %2 : vector<104x512xf32>
    %cst_3 = arith.constant dense<0.000000e+00> : vector<104xf32>
    %6 = vector.multi_reduction <add>, %5, %cst_3 [1] : vector<104x512xf32> to vector<104xf32>
    %7 = vector.shape_cast %6 : vector<104xf32> to vector<104x1xf32>
    %cst_4 = arith.constant 0.001953125 : f32
    %8 = vector.broadcast %cst_4 : f32 to vector<104x1xf32>
    %9 = arith.mulf %4, %8 : vector<104x1xf32>
    %cst_5 = arith.constant 0.001953125 : f32
    %10 = vector.broadcast %cst_5 : f32 to vector<104x1xf32>
    %11 = arith.mulf %7, %10 : vector<104x1xf32>
    %12 = arith.mulf %9, %9 : vector<104x1xf32>
    %13 = arith.subf %11, %12 : vector<104x1xf32>
    %cst_6 = arith.constant 0.000000e+00 : f32
    %14 = vector.broadcast %cst_6 : f32 to vector<104x1xf32>
    %15 = arith.maximumf %13, %14 : vector<104x1xf32>
    %cst_7 = arith.constant 9.99999974E-6 : f32
    %16 = vector.broadcast %cst_7 : f32 to vector<104x1xf32>
    %17 = arith.addf %15, %16 : vector<104x1xf32>
    %18 = math.rsqrt %17 : vector<104x1xf32>
    %c0_8 = arith.constant 0 : index
    %c0_9 = arith.constant 0 : index
    %19 = vector.load %arg3[%c0_8, %c0_9] : memref<1x512xf32, #tpu.memory_space<vmem>>, vector<1x512xf32>
    %c0_10 = arith.constant 0 : index
    %c0_11 = arith.constant 0 : index
    %20 = vector.load %arg4[%c0_10, %c0_11] : memref<1x512xf32, #tpu.memory_space<vmem>>, vector<1x512xf32>
    %21 = vector.broadcast %9 : vector<104x1xf32> to vector<104x512xf32>
    %22 = arith.subf %2, %21 : vector<104x512xf32>
    %23 = vector.broadcast %18 : vector<104x1xf32> to vector<104x512xf32>
    %24 = arith.mulf %22, %23 : vector<104x512xf32>
    %25 = vector.broadcast %19 : vector<1x512xf32> to vector<104x512xf32>
    %26 = arith.mulf %24, %25 : vector<104x512xf32>
    %27 = vector.broadcast %20 : vector<1x512xf32> to vector<104x512xf32>
    %28 = arith.addf %26, %27 : vector<104x512xf32>
    %c0_12 = arith.constant 0 : index
    %c0_13 = arith.constant 0 : index
    %29 = vector.load %arg5[%c0_12, %c0_13] : memref<104x512xf32, #tpu.memory_space<vmem>>, vector<104x512xf32>
    tpu.vector_store %arg5[%c0_12, %c0_13], %28 {strides = array<i32>} : memref<104x512xf32, #tpu.memory_space<vmem>>, vector<104x512xf32>,
    return
  }
  func.func @transform_0(%arg0: i32) -> (i32, i32) {
    %c0_i32 = arith.constant 0 : i32
    %c0_i32_0 = arith.constant 0 : i32
    return %arg0, %c0_i32 : i32, i32
  }
  func.func @transform_1(%arg0: i32) -> (i32, i32) {
    %c0_i32 = arith.constant 0 : i32
    %c0_i32_0 = arith.constant 0 : i32
    return %arg0, %c0_i32 : i32, i32
  }
  func.func @transform_2(%arg0: i32) -> (i32, i32) {
    %c0_i32 = arith.constant 0 : i32
    %c0_i32_0 = arith.constant 0 : i32
    %c0_i32_1 = arith.constant 0 : i32
    return %c0_i32, %c0_i32_0 : i32, i32
  }
  func.func @transform_3(%arg0: i32) -> (i32, i32) {
    %c0_i32 = arith.constant 0 : i32
    %c0_i32_0 = arith.constant 0 : i32
    %c0_i32_1 = arith.constant 0 : i32
    return %c0_i32, %c0_i32_0 : i32, i32
  }
  func.func @transform_4(%arg0: i32) -> (i32, i32) {
    %c0_i32 = arith.constant 0 : i32
    %c0_i32_0 = arith.constant 0 : i32
    return %arg0, %c0_i32 : i32, i32
  }
}

</mosaic_0001>

<llo_original>
// kernel: tpu_custom_call.1
$region0: #{tpu_custom_call.1}
  #allocation0 [shape = 'u32[]', space=smem, size = 0x4, offset = 0x4, fixed_abs, tag = 'smem constant byte address 0x4 - core index']
  #allocation1 [shape = 'u32[144,128]{1,0:T(1,128)}', space=vmem, size = 0x12000, scoped, tag = 'internal scratch']
  %s0 = inlined_call_operand.hbm [shape: f32[196,512], index: 0, kind: input, shape index: {}]
  %s1 = inlined_call_operand.hbm [shape: f32[196,512], index: 1, kind: input, shape index: {}]
  %s2 = inlined_call_operand.vmem [shape: f32[1,512], index: 2, kind: input, shape index: {}]
  %s3 = inlined_call_operand.vmem [shape: f32[1,512], index: 3, kind: input, shape index: {}]
  %s4 = inlined_call_operand.hbm [shape: f32[196,512], index: 4, kind: output, shape index: {}]
  %s5 = sld [smem:[#allocation0]]
  $region57: #{tpu_custom_call.1} parent=0
    _
  %s7 = ssub.s32 1, %s5
  %s8 = scalar_select 0, %s7, %s5
  $region1: #{tpu_custom_call.1} parent=0
    #allocation2 [shape = 'u8[425984]{0}', space=vmem, size = 0x68000, scoped, tag = 'input window, operand 0']
    #allocation3 [shape = 's32[2]{0}', space=sflag, size = 0x8, scoped, tag = 'scoped memory for tpu_custom_call.1']
    #allocation4 [shape = 's32[2]{0}', space=sflag, size = 0x8, scoped, tag = 'scoped memory for tpu_custom_call.1']
    #allocation5 [shape = 'u8[425984]{0}', space=vmem, size = 0x68000, scoped, tag = 'input window, operand 1']
    #allocation6 [shape = 's32[2]{0}', space=sflag, size = 0x8, scoped, tag = 'scoped memory for tpu_custom_call.1']
    #allocation7 [shape = 'u8[425984]{0}', space=vmem, size = 0x68000, scoped, tag = 'output window, operand 0']
    %9 = vsyncpa [#allocation3], 0
    %s10 = scalar_lea.sflag [#allocation3], 1
    %11 = vsyncpa %s10, 0
    %12 = vsyncpa [#allocation6], 0
    %s13 = scalar_lea.sflag [#allocation6], 1
    %14 = vsyncpa %s13, 0
    %15 = vsyncpa [#allocation4], 0
    %s16 = scalar_lea.sflag [#allocation4], 1
    %17 = vsyncpa %s16, 0
    loop: start=0, step=1, limit=4
    $region2: #{tpu_custom_call.1} parent=1 // loop_pre_header
      _
    $region3: #{tpu_custom_call.1} parent=1 // loop_header
      %s19 = sphi 0, %s23
      %p20 = scmp.ge.s32.totalorder %s19, 4
      %s29 = sphi 0, %s31
      %s32 = sphi 0, %s29
      %s33 = sphi 0, %s32
      %s49 = sphi 0, %s33
      %s55 = sphi 0, %s57
      %s58 = sphi 0, %s55
      %s59 = sphi 0, %s58
      %s75 = sphi 0, %s59
      %s79 = sphi 0, %s79
      %s81 = sphi 0, %s79
      %s82 = sphi 0, %s81
      %s96 = sphi 0, %s82
      %s100 = sphi 0, %s100
      %s102 = sphi 0, %s100
      %s103 = sphi 0, %s102
      %s117 = sphi 0, %s103
      %s123 = sphi 0, %s125
      %s126 = sphi 0, %s123
      %s127 = sphi 0, %s126
      %s143 = sphi 0, %s127
    $region4: #{tpu_custom_call.1} parent=1 // loop_header_branch
      %22 = sbr.rel (%p20) target = $region8
    $region5: #{tpu_custom_call.1} parent=1 // loop_body
      %s24 = ssub.s32 %s19, 1
      %s25 = ssub.s32 %s19, 2
      %s26 = sadd.s32 %s19, 1
      %s27 = ssub.s32 %s19, %s26
      %p28 = scmp.eq.s32.totalorder %s27, 0
      %s30 = sadd.s32 %s29, 1
      %s31 = scalar_select %p28, %s29, %s30
      %p34 = pneg %p28
      %p35 = scmp.eq.s32.totalorder %s19, 1
      %p36 = por %p34, %p35
      %p37 = scmp.ne.s32.totalorder %s29, %s32
      %p38 = scmp.eq.s32.totalorder %s19, 0
      %p39 = por %p37, %p38
      %p40 = scmp.ne.s32.totalorder %s29, %s32
      %p41 = scmp.eq.s32.totalorder %s24, 1
      %p42 = por %p40, %p41
      %p43 = scmp.ne.s32.totalorder %s32, %s33
      %p44 = scmp.eq.s32.totalorder %s24, 0
      %p45 = por %p43, %p44
      %p46 = scmp.ne.s32.totalorder %s32, %s33
      %p47 = scmp.eq.s32.totalorder %s25, 1
      %p48 = por %p46, %p47
      %p50 = scmp.ne.s32.totalorder %s33, %s49
      %p51 = scmp.eq.s32.totalorder %s25, 0
      %p52 = por %p50, %p51
      %s53 = ssub.s32 %s19, %s26
      %p54 = scmp.eq.s32.totalorder %s53, 0
      %s56 = sadd.s32 %s55, 1
      %s57 = scalar_select %p54, %s55, %s56
      %p60 = pneg %p54
      %p61 = scmp.eq.s32.totalorder %s19, 1
      %p62 = por %p60, %p61
      %p63 = scmp.ne.s32.totalorder %s55, %s58
      %p64 = scmp.eq.s32.totalorder %s19, 0
      %p65 = por %p63, %p64
      %p66 = scmp.ne.s32.totalorder %s55, %s58
      %p67 = scmp.eq.s32.totalorder %s24, 1
      %p68 = por %p66, %p67
      %p69 = scmp.ne.s32.totalorder %s58, %s59
      %p70 = scmp.eq.s32.totalorder %s24, 0
      %p71 = por %p69, %p70
      %p72 = scmp.ne.s32.totalorder %s58, %s59
      %p73 = scmp.eq.s32.totalorder %s25, 1
      %p74 = por %p72, %p73
      %p76 = scmp.ne.s32.totalorder %s59, %s75
      %p77 = scmp.eq.s32.totalorder %s25, 0
      %p78 = por %p76, %p77
      %s80 = sadd.s32 %s79, 1
      %p83 = scmp.eq.s32.totalorder %s19, 1
      %p84 = scmp.ne.s32.totalorder %s79, %s81
      %p85 = scmp.eq.s32.totalorder %s19, 0
      %p86 = por %p84, %p85
      %p87 = scmp.ne.s32.totalorder %s79, %s81
      %p88 = scmp.eq.s32.totalorder %s24, 1
      %p89 = por %p87, %p88
      %p90 = scmp.ne.s32.totalorder %s81, %s82
      %p91 = scmp.eq.s32.totalorder %s24, 0
      %p92 = por %p90, %p91
      %p93 = scmp.ne.s32.totalorder %s81, %s82
      %p94 = scmp.eq.s32.totalorder %s25, 1
      %p95 = por %p93, %p94
      %p97 = scmp.ne.s32.totalorder %s82, %s96
      %p98 = scmp.eq.s32.totalorder %s25, 0
      %p99 = por %p97, %p98
      %s101 = sadd.s32 %s100, 1
      %p104 = scmp.eq.s32.totalorder %s19, 1
      %p105 = scmp.ne.s32.totalorder %s100, %s102
      %p106 = scmp.eq.s32.totalorder %s19, 0
      %p107 = por %p105, %p106
      %p108 = scmp.ne.s32.totalorder %s100, %s102
      %p109 = scmp.eq.s32.totalorder %s24, 1
      %p110 = por %p108, %p109
      %p111 = scmp.ne.s32.totalorder %s102, %s103
      %p112 = scmp.eq.s32.totalorder %s24, 0
      %p113 = por %p111, %p112
      %p114 = scmp.ne.s32.totalorder %s102, %s103
      %p115 = scmp.eq.s32.totalorder %s25, 1
      %p116 = por %p114, %p115
      %p118 = scmp.ne.s32.totalorder %s103, %s117
      %p119 = scmp.eq.s32.totalorder %s25, 0
      %p120 = por %p118, %p119
      %s121 = ssub.s32 %s19, %s26
      %p122 = scmp.eq.s32.totalorder %s121, 0
      %s124 = sadd.s32 %s123, 1
      %s125 = scalar_select %p122, %s123, %s124
      %p128 = pneg %p122
      %p129 = scmp.eq.s32.totalorder %s19, 1
      %p130 = por %p128, %p129
      %p131 = scmp.ne.s32.totalorder %s123, %s126
      %p132 = scmp.eq.s32.totalorder %s19, 0
      %p133 = por %p131, %p132
      %p134 = scmp.ne.s32.totalorder %s123, %s126
      %p135 = scmp.eq.s32.totalorder %s24, 1
      %p136 = por %p134, %p135
      %p137 = scmp.ne.s32.totalorder %s126, %s127
      %p138 = scmp.eq.s32.totalorder %s24, 0
      %p139 = por %p137, %p138
      %p140 = scmp.ne.s32.totalorder %s126, %s127
      %p141 = scmp.eq.s32.totalorder %s25, 1
      %p142 = por %p140, %p141
      %p144 = scmp.ne.s32.totalorder %s127, %s143
      %p145 = scmp.eq.s32.totalorder %s25, 0
      %p146 = por %p144, %p145
      %p147 = scmp.le.s32.totalorder 1, %s19
      %p148 = scmp.lt.s32.totalorder %s19, 3
      %p149 = pnand %p147, %p148
      %p150 = pneg %p149
      // Predicated region
      $region9: #{tpu_custom_call.1} parent=5 // pred_check
        _
      $region10: #{tpu_custom_call.1} parent=5 // pred_check_branch
        %152 = sbr.rel (%p149) target = $region12
      $region11: #{tpu_custom_call.1} parent=5 // pred_region
        %s153 = ssub.s32 %s19, 1
        // Predicated region
        $region13: #{tpu_custom_call.1} parent=11 // pred_check
          %p154 = pneg %p92
        $region14: #{tpu_custom_call.1} parent=11 // pred_check_branch
          %156 = sbr.rel (%p154) target = $region16
        $region15: #{tpu_custom_call.1} parent=11 // pred_region
          _
        $region16: #{tpu_custom_call.1} parent=11 // pred_fallthru
          _
        // Predicated region
        $region17: #{tpu_custom_call.1} parent=11 // pred_check
          %p157 = pneg %p113
        $region18: #{tpu_custom_call.1} parent=11 // pred_check_branch
          %159 = sbr.rel (%p157) target = $region20
        $region19: #{tpu_custom_call.1} parent=11 // pred_region
          _
        $region20: #{tpu_custom_call.1} parent=11 // pred_fallthru
          _
      $region12: #{tpu_custom_call.1} parent=5 // pred_fallthru
        _
      %p160 = scmp.lt.s32.totalorder %s19, 2
      // Predicated region
      $region21: #{tpu_custom_call.1} parent=5 // pred_check
        %p161 = pneg %p160
      $region22: #{tpu_custom_call.1} parent=5 // pred_check_branch
        %163 = sbr.rel (%p161) target = $region24
      $region23: #{tpu_custom_call.1} parent=5 // pred_region
        // Predicated region
        $region25: #{tpu_custom_call.1} parent=23 // pred_check
          %p164 = pneg %p39
        $region26: #{tpu_custom_call.1} parent=23 // pred_check_branch
          %166 = sbr.rel (%p164) target = $region28
        $region27: #{tpu_custom_call.1} parent=23 // pred_region
          %s167 = sand.u32 %s29, 1
          %s168 = scalar_lea.sflag [#allocation3], %s167
          %s169 = sand.u32 %s29, 1
          %s170 = smul.addr %s169, 416
          %s171 = scalar_lea.vmem [#allocation2], %s170
          %s172 = smul.u32 13, %s19
          %s173 = ssub.s32 25, %s172
          %p174 = scmp.lt.s32.totalorder %s173, 13
          %s175 = scalar_select %p174, %s173, 13
          %s176 = smul.u32 128, %s175
          %s177 = smul.u32 %s176, 4
          %s179 = ssub.s32 6656, %s177
          %180 = vsyncadd %s168, %s179
          %p181 = scmp.ne.s32.totalorder 0, %s177
          %s182 = smul.addr %s172, 4
          %s183 = smul.addr %s182, 128
          %s184 = scalar_lea.hbm %s0, %s183
          %s185 = smul.u32 32, %s175
          %s186 = sshll.u32 %s171, 4
          %s187 = int_to_ptr.vmem [resolvable:$true] %s186
          %s188 = sshll.u32 %s185, 4
          %192 = dma.hbm_to_vmem [thread:$0]  (%p181), %s184, %s188, %s187, %s168, 512, 512, 32
        $region28: #{tpu_custom_call.1} parent=23 // pred_fallthru
          _
        // Predicated region
        $region29: #{tpu_custom_call.1} parent=23 // pred_check
          %p193 = pneg %p65
        $region30: #{tpu_custom_call.1} parent=23 // pred_check_branch
          %195 = sbr.rel (%p193) target = $region32
        $region31: #{tpu_custom_call.1} parent=23 // pred_region
          %s196 = sand.u32 %s55, 1
          %s197 = scalar_lea.sflag [#allocation6], %s196
          %s198 = sand.u32 %s55, 1
          %s199 = smul.addr %s198, 416
          %s200 = scalar_lea.vmem [#allocation5], %s199
          %s201 = smul.u32 13, %s19
          %s202 = ssub.s32 25, %s201
          %p203 = scmp.lt.s32.totalorder %s202, 13
          %s204 = scalar_select %p203, %s202, 13
          %s205 = smul.u32 128, %s204
          %s206 = smul.u32 %s205, 4
          %s208 = ssub.s32 6656, %s206
          %209 = vsyncadd %s197, %s208
          %p210 = scmp.ne.s32.totalorder 0, %s206
          %s211 = smul.addr %s201, 4
          %s212 = smul.addr %s211, 128
          %s213 = scalar_lea.hbm %s1, %s212
          %s214 = smul.u32 32, %s204
          %s215 = sshll.u32 %s200, 4
          %s216 = int_to_ptr.vmem [resolvable:$true] %s215
          %s217 = sshll.u32 %s214, 4
          %221 = dma.hbm_to_vmem [thread:$0]  (%p210), %s213, %s217, %s216, %s197, 512, 512, 32
        $region32: #{tpu_custom_call.1} parent=23 // pred_fallthru
          _
      $region24: #{tpu_custom_call.1} parent=5 // pred_fallthru
        _
      %p222 = scmp.le.s32.totalorder 1, %s19
      %p223 = scmp.lt.s32.totalorder %s19, 3
      %p224 = pnand %p222, %p223
      %p225 = pneg %p224
      // Predicated region
      $region33: #{tpu_custom_call.1} parent=5 // pred_check
        _
      $region34: #{tpu_custom_call.1} parent=5 // pred_check_branch
        %227 = sbr.rel (%p224) target = $region36
      $region35: #{tpu_custom_call.1} parent=5 // pred_region
        %s228 = ssub.s32 %s19, 1
        %s229 = sand.u32 %s32, 1
        %s230 = scalar_lea.sflag [#allocation3], %s229
        %s231 = sand.u32 %s32, 1
        %s232 = smul.addr %s231, 416
        %s233 = scalar_lea.vmem [#allocation2], %s232
        // Predicated region
        $region37: #{tpu_custom_call.1} parent=35 // pred_check
          %p234 = pneg %p45
        $region38: #{tpu_custom_call.1} parent=35 // pred_check_branch
          %236 = sbr.rel (%p234) target = $region40
        $region39: #{tpu_custom_call.1} parent=35 // pred_region
          %237 = dma.done %s230, 6656
        $region40: #{tpu_custom_call.1} parent=35 // pred_fallthru
          _
        %s238 = sand.u32 %s58, 1
        %s239 = scalar_lea.sflag [#allocation6], %s238
        %s240 = sand.u32 %s58, 1
        %s241 = smul.addr %s240, 416
        %s242 = scalar_lea.vmem [#allocation5], %s241
        // Predicated region
        $region41: #{tpu_custom_call.1} parent=35 // pred_check
          %p243 = pneg %p71
        $region42: #{tpu_custom_call.1} parent=35 // pred_check_branch
          %245 = sbr.rel (%p243) target = $region44
        $region43: #{tpu_custom_call.1} parent=35 // pred_region
          %246 = dma.done %s239, 6656
        $region44: #{tpu_custom_call.1} parent=35 // pred_fallthru
          _
        %s247 = sand.u32 %s32, 1
        %s248 = scalar_lea.sflag [#allocation3], %s247
        %s249 = sand.u32 %s32, 1
        %s250 = smul.addr %s249, 416
        %s251 = scalar_lea.vmem [#allocation2], %s250
        %p252 = pneg %p45
        %p253 = pneg %p42
        %s254 = sand.u32 %s58, 1
        %s255 = scalar_lea.sflag [#allocation6], %s254
        %s256 = sand.u32 %s58, 1
        %s257 = smul.addr %s256, 416
        %s258 = scalar_lea.vmem [#allocation5], %s257
        %p259 = pneg %p71
        %p260 = pneg %p68
        %p261 = pneg %p92
        %p262 = pneg %p89
        %p263 = pneg %p113
        %p264 = pneg %p110
        %p265 = pneg %p139
        %p266 = pneg %p136
        %s267 = sand.u32 %s126, 1
        %s268 = scalar_lea.sflag [#allocation4], %s267
        %s269 = sand.u32 %s126, 1
        %s270 = smul.addr %s269, 416
        %s271 = scalar_lea.vmem [#allocation7], %s270
        %s272 = smul.u32 13, %s24
        %s273 = ssub.s32 25, %s272
        %p274 = scmp.lt.s32.totalorder %s273, 13
        %s275 = scalar_select %p274, %s273, 13
        %s276 = smul.u32 128, %s275
        %s277 = smul.u32 %s276, 4
        %s278 = smul.u32 13, %s24
        %s279 = ssub.s32 25, %s278
        %p280 = scmp.lt.s32.totalorder %s279, 13
        %s281 = scalar_select %p280, %s279, 13
        %s282 = smul.u32 128, %s281
        %s283 = smul.u32 %s282, 4
        %s284 = smul.u32 13, %s24
        %s285 = ssub.s32 25, %s284
        %p286 = scmp.lt.s32.totalorder %s285, 13
        %s287 = scalar_select %p286, %s285, 13
        %s288 = smul.u32 128, %s287
        %s289 = smul.u32 %s288, 4
        %v290 = vld [vmem:[%s233] sm:$0xff]
        %v291 = vld [vmem:[%s233 + $0x8] sm:$0xff]
        %v292 = vld [vmem:[%s233 + $0x10] sm:$0xff]
        %v293 = vld [vmem:[%s233 + $0x18] sm:$0xff]
        %v294 = vld [vmem:[%s233 + $0x20] sm:$0xff]
        %v295 = vld [vmem:[%s233 + $0x28] sm:$0xff]
        %v296 = vld [vmem:[%s233 + $0x30] sm:$0xff]
        %v297 = vld [vmem:[%s233 + $0x38] sm:$0xff]
        %v298 = vld [vmem:[%s233 + $0x40] sm:$0xff]
        %v299 = vld [vmem:[%s233 + $0x48] sm:$0xff]
        %v300 = vld [vmem:[%s233 + $0x50] sm:$0xff]
        %v301 = vld [vmem:[%s233 + $0x58] sm:$0xff]
        %v302 = vld [vmem:[%s233 + $0x60] sm:$0xff]
        %v303 = vld [vmem:[%s233 + $0x68] sm:$0xff]
        %v304 = vld [vmem:[%s233 + $0x70] sm:$0xff]
        %v305 = vld [vmem:[%s233 + $0x78] sm:$0xff]
        %v306 = vld [vmem:[%s233 + $0x80] sm:$0xff]
        %v307 = vld [vmem:[%s233 + $0x88] sm:$0xff]
        %v308 = vld [vmem:[%s233 + $0x90] sm:$0xff]
        %v309 = vld [vmem:[%s233 + $0x98] sm:$0xff]
        %v310 = vld [vmem:[%s233 + $0xa0] sm:$0xff]
        %v311 = vld [vmem:[%s233 + $0xa8] sm:$0xff]
        %v312 = vld [vmem:[%s233 + $0xb0] sm:$0xff]
        %v313 = vld [vmem:[%s233 + $0xb8] sm:$0xff]
        %v314 = vld [vmem:[%s233 + $0xc0] sm:$0xff]
        %v315 = vld [vmem:[%s233 + $0xc8] sm:$0xff]
        %v316 = vld [vmem:[%s233 + $0xd0] sm:$0xff]
        %v317 = vld [vmem:[%s233 + $0xd8] sm:$0xff]
        %v318 = vld [vmem:[%s233 + $0xe0] sm:$0xff]
        %v319 = vld [vmem:[%s233 + $0xe8] sm:$0xff]
        %v320 = vld [vmem:[%s233 + $0xf0] sm:$0xff]
        %v321 = vld [vmem:[%s233 + $0xf8] sm:$0xff]
        %v322 = vld [vmem:[%s233 + $0x100] sm:$0xff]
        %v323 = vld [vmem:[%s233 + $0x108] sm:$0xff]
        %v324 = vld [vmem:[%s233 + $0x110] sm:$0xff]
        %v325 = vld [vmem:[%s233 + $0x118] sm:$0xff]
        %v326 = vld [vmem:[%s233 + $0x120] sm:$0xff]
        %v327 = vld [vmem:[%s233 + $0x128] sm:$0xff]
        %v328 = vld [vmem:[%s233 + $0x130] sm:$0xff]
        %v329 = vld [vmem:[%s233 + $0x138] sm:$0xff]
        %v330 = vld [vmem:[%s233 + $0x140] sm:$0xff]
        %v331 = vld [vmem:[%s233 + $0x148] sm:$0xff]
        %v332 = vld [vmem:[%s233 + $0x150] sm:$0xff]
        %v333 = vld [vmem:[%s233 + $0x158] sm:$0xff]
        %v334 = vld [vmem:[%s233 + $0x160] sm:$0xff]
        %v335 = vld [vmem:[%s233 + $0x168] sm:$0xff]
        %v336 = vld [vmem:[%s233 + $0x170] sm:$0xff]
        %v337 = vld [vmem:[%s233 + $0x178] sm:$0xff]
        %v338 = vld [vmem:[%s233 + $0x180] sm:$0xff]
        %v339 = vld [vmem:[%s233 + $0x188] sm:$0xff]
        %v340 = vld [vmem:[%s233 + $0x190] sm:$0xff]
        %v341 = vld [vmem:[%s233 + $0x198] sm:$0xff]
        %v342 = vld [vmem:[%s242] sm:$0xff]
        %v343 = vld [vmem:[%s242 + $0x8] sm:$0xff]
        %v344 = vld [vmem:[%s242 + $0x10] sm:$0xff]
        %v345 = vld [vmem:[%s242 + $0x18] sm:$0xff]
        %v346 = vld [vmem:[%s242 + $0x20] sm:$0xff]
        %v347 = vld [vmem:[%s242 + $0x28] sm:$0xff]
        %v348 = vld [vmem:[%s242 + $0x30] sm:$0xff]
        %v349 = vld [vmem:[%s242 + $0x38] sm:$0xff]
        %v350 = vld [vmem:[%s242 + $0x40] sm:$0xff]
        %v351 = vld [vmem:[%s242 + $0x48] sm:$0xff]
        %v352 = vld [vmem:[%s242 + $0x50] sm:$0xff]
        %v353 = vld [vmem:[%s242 + $0x58] sm:$0xff]
        %v354 = vld [vmem:[%s242 + $0x60] sm:$0xff]
        %v355 = vld [vmem:[%s242 + $0x68] sm:$0xff]
        %v356 = vld [vmem:[%s242 + $0x70] sm:$0xff]
        %v357 = vld [vmem:[%s242 + $0x78] sm:$0xff]
        %v358 = vld [vmem:[%s242 + $0x80] sm:$0xff]
        %v359 = vld [vmem:[%s242 + $0x88] sm:$0xff]
        %v360 = vld [vmem:[%s242 + $0x90] sm:$0xff]
        %v361 = vld [vmem:[%s242 + $0x98] sm:$0xff]
        %v362 = vld [vmem:[%s242 + $0xa0] sm:$0xff]
        %v363 = vld [vmem:[%s242 + $0xa8] sm:$0xff]
        %v364 = vld [vmem:[%s242 + $0xb0] sm:$0xff]
        %v365 = vld [vmem:[%s242 + $0xb8] sm:$0xff]
        %v366 = vld [vmem:[%s242 + $0xc0] sm:$0xff]
        %v367 = vld [vmem:[%s242 + $0xc8] sm:$0xff]
        %v368 = vld [vmem:[%s242 + $0xd0] sm:$0xff]
        %v369 = vld [vmem:[%s242 + $0xd8] sm:$0xff]
        %v370 = vld [vmem:[%s242 + $0xe0] sm:$0xff]
        %v371 = vld [vmem:[%s242 + $0xe8] sm:$0xff]
        %v372 = vld [vmem:[%s242 + $0xf0] sm:$0xff]
        %v373 = vld [vmem:[%s242 + $0xf8] sm:$0xff]
        %v374 = vld [vmem:[%s242 + $0x100] sm:$0xff]
        %v375 = vld [vmem:[%s242 + $0x108] sm:$0xff]
        %v376 = vld [vmem:[%s242 + $0x110] sm:$0xff]
        %v377 = vld [vmem:[%s242 + $0x118] sm:$0xff]
        %v378 = vld [vmem:[%s242 + $0x120] sm:$0xff]
        %v379 = vld [vmem:[%s242 + $0x128] sm:$0xff]
        %v380 = vld [vmem:[%s242 + $0x130] sm:$0xff]
        %v381 = vld [vmem:[%s242 + $0x138] sm:$0xff]
        %v382 = vld [vmem:[%s242 + $0x140] sm:$0xff]
        %v383 = vld [vmem:[%s242 + $0x148] sm:$0xff]
        %v384 = vld [vmem:[%s242 + $0x150] sm:$0xff]
        %v385 = vld [vmem:[%s242 + $0x158] sm:$0xff]
        %v386 = vld [vmem:[%s242 + $0x160] sm:$0xff]
        %v387 = vld [vmem:[%s242 + $0x168] sm:$0xff]
        %v388 = vld [vmem:[%s242 + $0x170] sm:$0xff]
        %v389 = vld [vmem:[%s242 + $0x178] sm:$0xff]
        %v390 = vld [vmem:[%s242 + $0x180] sm:$0xff]
        %v391 = vld [vmem:[%s242 + $0x188] sm:$0xff]
        %v392 = vld [vmem:[%s242 + $0x190] sm:$0xff]
        %v393 = vld [vmem:[%s242 + $0x198] sm:$0xff]
        %v394 = vadd.f32 %v290, %v342
        %v395 = vadd.f32 %v291, %v343
        %v396 = vadd.f32 %v292, %v344
        %v397 = vadd.f32 %v293, %v345
        %v398 = vadd.f32 %v294, %v346
        %v399 = vadd.f32 %v295, %v347
        %v400 = vadd.f32 %v296, %v348
        %v401 = vadd.f32 %v297, %v349
        %v402 = vadd.f32 %v298, %v350
        %v403 = vadd.f32 %v299, %v351
        %v404 = vadd.f32 %v300, %v352
        %v405 = vadd.f32 %v301, %v353
        %v406 = vadd.f32 %v302, %v354
        %v407 = vadd.f32 %v303, %v355
        %v408 = vadd.f32 %v304, %v356
        %v409 = vadd.f32 %v305, %v357
        %v410 = vadd.f32 %v306, %v358
        %v411 = vadd.f32 %v307, %v359
        %v412 = vadd.f32 %v308, %v360
        %v413 = vadd.f32 %v309, %v361
        %v414 = vadd.f32 %v310, %v362
        %v415 = vadd.f32 %v311, %v363
        %v416 = vadd.f32 %v312, %v364
        %v417 = vadd.f32 %v313, %v365
        %v418 = vadd.f32 %v314, %v366
        %v419 = vadd.f32 %v315, %v367
        %v420 = vadd.f32 %v316, %v368
        %v421 = vadd.f32 %v317, %v369
        %v422 = vadd.f32 %v318, %v370
        %v423 = vadd.f32 %v319, %v371
        %v424 = vadd.f32 %v320, %v372
        %v425 = vadd.f32 %v321, %v373
        %v426 = vadd.f32 %v322, %v374
        %v427 = vadd.f32 %v323, %v375
        %v428 = vadd.f32 %v324, %v376
        %v429 = vadd.f32 %v325, %v377
        %v430 = vadd.f32 %v326, %v378
        %v431 = vadd.f32 %v327, %v379
        %v432 = vadd.f32 %v328, %v380
        %v433 = vadd.f32 %v329, %v381
        %v434 = vadd.f32 %v330, %v382
        %v435 = vadd.f32 %v331, %v383
        %v436 = vadd.f32 %v332, %v384
        %v437 = vadd.f32 %v333, %v385
        %v438 = vadd.f32 %v334, %v386
        %v439 = vadd.f32 %v335, %v387
        %v440 = vadd.f32 %v336, %v388
        %v441 = vadd.f32 %v337, %v389
        %v442 = vadd.f32 %v338, %v390
        %v443 = vadd.f32 %v339, %v391
        %v444 = vadd.f32 %v340, %v392
        %v445 = vadd.f32 %v341, %v393
        %v446 = vadd.f32 %v394, %v395
        %v447 = vadd.f32 %v446, %v396
        %v448 = vadd.f32 %v447, %v397
        %449 = vadd.xlane.f32.xlu0 %v448
        %v450 = vpop.xlane.xlu0 %449
        %v451 = vadd.f32 %v398, %v399
        %v452 = vadd.f32 %v451, %v400
        %v453 = vadd.f32 %v452, %v401
        %454 = vadd.xlane.f32.xlu0 %v453
        %v455 = vpop.xlane.xlu0 %454
        %v456 = vadd.f32 %v402, %v403
        %v457 = vadd.f32 %v456, %v404
        %v458 = vadd.f32 %v457, %v405
        %459 = vadd.xlane.f32.xlu0 %v458
        %v460 = vpop.xlane.xlu0 %459
        %v461 = vadd.f32 %v406, %v407
        %v462 = vadd.f32 %v461, %v408
        %v463 = vadd.f32 %v462, %v409
        %464 = vadd.xlane.f32.xlu0 %v463
        %v465 = vpop.xlane.xlu0 %464
        %v466 = vadd.f32 %v410, %v411
        %v467 = vadd.f32 %v466, %v412
        %v468 = vadd.f32 %v467, %v413
        %469 = vadd.xlane.f32.xlu0 %v468
        %v470 = vpop.xlane.xlu0 %469
        %v471 = vadd.f32 %v414, %v415
        %v472 = vadd.f32 %v471, %v416
        %v473 = vadd.f32 %v472, %v417
        %474 = vadd.xlane.f32.xlu0 %v473
        %v475 = vpop.xlane.xlu0 %474
        %v476 = vadd.f32 %v418, %v419
        %v477 = vadd.f32 %v476, %v420
        %v478 = vadd.f32 %v477, %v421
        %479 = vadd.xlane.f32.xlu0 %v478
        %v480 = vpop.xlane.xlu0 %479
        %v481 = vadd.f32 %v422, %v423
        %v482 = vadd.f32 %v481, %v424
        %v483 = vadd.f32 %v482, %v425
        %484 = vadd.xlane.f32.xlu0 %v483
        %v485 = vpop.xlane.xlu0 %484
        %v486 = vadd.f32 %v426, %v427
        %v487 = vadd.f32 %v486, %v428
        %v488 = vadd.f32 %v487, %v429
        %489 = vadd.xlane.f32.xlu0 %v488
        %v490 = vpop.xlane.xlu0 %489
        %v491 = vadd.f32 %v430, %v431
        %v492 = vadd.f32 %v491, %v432
        %v493 = vadd.f32 %v492, %v433
        %494 = vadd.xlane.f32.xlu0 %v493
        %v495 = vpop.xlane.xlu0 %494
        %v496 = vadd.f32 %v434, %v435
        %v497 = vadd.f32 %v496, %v436
        %v498 = vadd.f32 %v497, %v437
        %499 = vadd.xlane.f32.xlu0 %v498
        %v500 = vpop.xlane.xlu0 %499
        %v501 = vadd.f32 %v438, %v439
        %v502 = vadd.f32 %v501, %v440
        %v503 = vadd.f32 %v502, %v441
        %504 = vadd.xlane.f32.xlu0 %v503
        %v505 = vpop.xlane.xlu0 %504
        %v506 = vadd.f32 %v442, %v443
        %v507 = vadd.f32 %v506, %v444
        %v508 = vadd.f32 %v507, %v445
        %509 = vadd.xlane.f32.xlu0 %v508
        %v510 = vpop.xlane.xlu0 %509
        %v511 = vmul.f32 %v394, %v394
        %v512 = vmul.f32 %v395, %v395
        %v513 = vmul.f32 %v396, %v396
        %v514 = vmul.f32 %v397, %v397
        %v515 = vmul.f32 %v398, %v398
        %v516 = vmul.f32 %v399, %v399
        %v517 = vmul.f32 %v400, %v400
        %v518 = vmul.f32 %v401, %v401
        %v519 = vmul.f32 %v402, %v402
        %v520 = vmul.f32 %v403, %v403
        %v521 = vmul.f32 %v404, %v404
        %v522 = vmul.f32 %v405, %v405
        %v523 = vmul.f32 %v406, %v406
        %v524 = vmul.f32 %v407, %v407
        %v525 = vmul.f32 %v408, %v408
        %v526 = vmul.f32 %v409, %v409
        %v527 = vmul.f32 %v410, %v410
        %v528 = vmul.f32 %v411, %v411
        %v529 = vmul.f32 %v412, %v412
        %v530 = vmul.f32 %v413, %v413
        %v531 = vmul.f32 %v414, %v414
        %v532 = vmul.f32 %v415, %v415
        %v533 = vmul.f32 %v416, %v416
        %v534 = vmul.f32 %v417, %v417
        %v535 = vmul.f32 %v418, %v418
        %v536 = vmul.f32 %v419, %v419
        %v537 = vmul.f32 %v420, %v420
        %v538 = vmul.f32 %v421, %v421
        %v539 = vmul.f32 %v422, %v422
        %v540 = vmul.f32 %v423, %v423
        %v541 = vmul.f32 %v424, %v424
        %v542 = vmul.f32 %v425, %v425
        %v543 = vmul.f32 %v426, %v426
        %v544 = vmul.f32 %v427, %v427
        %v545 = vmul.f32 %v428, %v428
        %v546 = vmul.f32 %v429, %v429
        %v547 = vmul.f32 %v430, %v430
        %v548 = vmul.f32 %v431, %v431
        %v549 = vmul.f32 %v432, %v432
        %v550 = vmul.f32 %v433, %v433
        %v551 = vmul.f32 %v434, %v434
        %v552 = vmul.f32 %v435, %v435
        %v553 = vmul.f32 %v436, %v436
        %v554 = vmul.f32 %v437, %v437
        %v555 = vmul.f32 %v438, %v438
        %v556 = vmul.f32 %v439, %v439
        %v557 = vmul.f32 %v440, %v440
        %v558 = vmul.f32 %v441, %v441
        %v559 = vmul.f32 %v442, %v442
        %v560 = vmul.f32 %v443, %v443
        %v561 = vmul.f32 %v444, %v444
        %v562 = vmul.f32 %v445, %v445
        %v563 = vadd.f32 %v511, %v512
        %v564 = vadd.f32 %v563, %v513
        %v565 = vadd.f32 %v564, %v514
        %566 = vadd.xlane.f32.xlu0 %v565
        %v567 = vpop.xlane.xlu0 %566
        %v568 = vadd.f32 %v515, %v516
        %v569 = vadd.f32 %v568, %v517
        %v570 = vadd.f32 %v569, %v518
        %571 = vadd.xlane.f32.xlu0 %v570
        %v572 = vpop.xlane.xlu0 %571
        %v573 = vadd.f32 %v519, %v520
        %v574 = vadd.f32 %v573, %v521
        %v575 = vadd.f32 %v574, %v522
        %576 = vadd.xlane.f32.xlu0 %v575
        %v577 = vpop.xlane.xlu0 %576
        %v578 = vadd.f32 %v523, %v524
        %v579 = vadd.f32 %v578, %v525
        %v580 = vadd.f32 %v579, %v526
        %581 = vadd.xlane.f32.xlu0 %v580
        %v582 = vpop.xlane.xlu0 %581
        %v583 = vadd.f32 %v527, %v528
        %v584 = vadd.f32 %v583, %v529
        %v585 = vadd.f32 %v584, %v530
        %586 = vadd.xlane.f32.xlu0 %v585
        %v587 = vpop.xlane.xlu0 %586
        %v588 = vadd.f32 %v531, %v532
        %v589 = vadd.f32 %v588, %v533
        %v590 = vadd.f32 %v589, %v534
        %591 = vadd.xlane.f32.xlu0 %v590
        %v592 = vpop.xlane.xlu0 %591
        %v593 = vadd.f32 %v535, %v536
        %v594 = vadd.f32 %v593, %v537
        %v595 = vadd.f32 %v594, %v538
        %596 = vadd.xlane.f32.xlu0 %v595
        %v597 = vpop.xlane.xlu0 %596
        %v598 = vadd.f32 %v539, %v540
        %v599 = vadd.f32 %v598, %v541
        %v600 = vadd.f32 %v599, %v542
        %601 = vadd.xlane.f32.xlu0 %v600
        %v602 = vpop.xlane.xlu0 %601
        %v603 = vadd.f32 %v543, %v544
        %v604 = vadd.f32 %v603, %v545
        %v605 = vadd.f32 %v604, %v546
        %606 = vadd.xlane.f32.xlu0 %v605
        %v607 = vpop.xlane.xlu0 %606
        %v608 = vadd.f32 %v547, %v548
        %v609 = vadd.f32 %v608, %v549
        %v610 = vadd.f32 %v609, %v550
        %611 = vadd.xlane.f32.xlu0 %v610
        %v612 = vpop.xlane.xlu0 %611
        %v613 = vadd.f32 %v551, %v552
        %v614 = vadd.f32 %v613, %v553
        %v615 = vadd.f32 %v614, %v554
        %616 = vadd.xlane.f32.xlu0 %v615
        %v617 = vpop.xlane.xlu0 %616
        %v618 = vadd.f32 %v555, %v556
        %v619 = vadd.f32 %v618, %v557
        %v620 = vadd.f32 %v619, %v558
        %621 = vadd.xlane.f32.xlu0 %v620
        %v622 = vpop.xlane.xlu0 %621
        %v623 = vadd.f32 %v559, %v560
        %v624 = vadd.f32 %v623, %v561
        %v625 = vadd.f32 %v624, %v562
        %626 = vadd.xlane.f32.xlu0 %v625
        %v627 = vpop.xlane.xlu0 %626
        %v628 = vmul.f32 %v450, 0.001953125
        %v629 = vmul.f32 %v455, 0.001953125
        %v630 = vmul.f32 %v460, 0.001953125
        %v631 = vmul.f32 %v465, 0.001953125
        %v632 = vmul.f32 %v470, 0.001953125
        %v633 = vmul.f32 %v475, 0.001953125
        %v634 = vmul.f32 %v480, 0.001953125
        %v635 = vmul.f32 %v485, 0.001953125
        %v636 = vmul.f32 %v490, 0.001953125
        %v637 = vmul.f32 %v495, 0.001953125
        %v638 = vmul.f32 %v500, 0.001953125
        %v639 = vmul.f32 %v505, 0.001953125
        %v640 = vmul.f32 %v510, 0.001953125
        %v641 = vmul.f32 %v567, 0.001953125
        %v642 = vmul.f32 %v572, 0.001953125
        %v643 = vmul.f32 %v577, 0.001953125
        %v644 = vmul.f32 %v582, 0.001953125
        %v645 = vmul.f32 %v587, 0.001953125
        %v646 = vmul.f32 %v592, 0.001953125
        %v647 = vmul.f32 %v597, 0.001953125
        %v648 = vmul.f32 %v602, 0.001953125
        %v649 = vmul.f32 %v607, 0.001953125
        %v650 = vmul.f32 %v612, 0.001953125
        %v651 = vmul.f32 %v617, 0.001953125
        %v652 = vmul.f32 %v622, 0.001953125
        %v653 = vmul.f32 %v627, 0.001953125
        %v654 = vmul.f32 %v628, %v628
        %v655 = vmul.f32 %v629, %v629
        %v656 = vmul.f32 %v630, %v630
        %v657 = vmul.f32 %v631, %v631
        %v658 = vmul.f32 %v632, %v632
        %v659 = vmul.f32 %v633, %v633
        %v660 = vmul.f32 %v634, %v634
        %v661 = vmul.f32 %v635, %v635
        %v662 = vmul.f32 %v636, %v636
        %v663 = vmul.f32 %v637, %v637
        %v664 = vmul.f32 %v638, %v638
        %v665 = vmul.f32 %v639, %v639
        %v666 = vmul.f32 %v640, %v640
        %v667 = vsub.f32 %v641, %v654
        %v668 = vsub.f32 %v642, %v655
        %v669 = vsub.f32 %v643, %v656
        %v670 = vsub.f32 %v644, %v657
        %v671 = vsub.f32 %v645, %v658
        %v672 = vsub.f32 %v646, %v659
        %v673 = vsub.f32 %v647, %v660
        %v674 = vsub.f32 %v648, %v661
        %v675 = vsub.f32 %v649, %v662
        %v676 = vsub.f32 %v650, %v663
        %v677 = vsub.f32 %v651, %v664
        %v678 = vsub.f32 %v652, %v665
        %v679 = vsub.f32 %v653, %v666
        %v680 = vmax.f32 %v667, 0.0
        %v681 = vmax.f32 %v668, 0.0
        %v682 = vmax.f32 %v669, 0.0
        %v683 = vmax.f32 %v670, 0.0
        %v684 = vmax.f32 %v671, 0.0
        %v685 = vmax.f32 %v672, 0.0
        %v686 = vmax.f32 %v673, 0.0
        %v687 = vmax.f32 %v674, 0.0
        %v688 = vmax.f32 %v675, 0.0
        %v689 = vmax.f32 %v676, 0.0
        %v690 = vmax.f32 %v677, 0.0
        %v691 = vmax.f32 %v678, 0.0
        %v692 = vmax.f32 %v679, 0.0
        %v693 = vadd.f32 %v680, 1e-05
        %v694 = vadd.f32 %v681, 1e-05
        %v695 = vadd.f32 %v682, 1e-05
        %v696 = vadd.f32 %v683, 1e-05
        %v697 = vadd.f32 %v684, 1e-05
        %v698 = vadd.f32 %v685, 1e-05
        %v699 = vadd.f32 %v686, 1e-05
        %v700 = vadd.f32 %v687, 1e-05
        %v701 = vadd.f32 %v688, 1e-05
        %v702 = vadd.f32 %v689, 1e-05
        %v703 = vadd.f32 %v690, 1e-05
        %v704 = vadd.f32 %v691, 1e-05
        %v705 = vadd.f32 %v692, 1e-05
        %v706 = vrsqrt.pop %v693
        %v707 = vrsqrt.pop %v694
        %v708 = vrsqrt.pop %v695
        %v709 = vrsqrt.pop %v696
        %v710 = vrsqrt.pop %v697
        %v711 = vrsqrt.pop %v698
        %v712 = vrsqrt.pop %v699
        %v713 = vrsqrt.pop %v700
        %v714 = vrsqrt.pop %v701
        %v715 = vrsqrt.pop %v702
        %v716 = vrsqrt.pop %v703
        %v717 = vrsqrt.pop %v704
        %v718 = vrsqrt.pop %v705
        %v719 = vld [vmem:[%s2] sm:$0xf]
        %v720 = vld [vmem:[%s3] sm:$0xf]
        %v721 = vsub.f32 %v394, %v628
        %v722 = vsub.f32 %v395, %v628
        %v723 = vsub.f32 %v396, %v628
        %v724 = vsub.f32 %v397, %v628
        %v725 = vsub.f32 %v398, %v629
        %v726 = vsub.f32 %v399, %v629
        %v727 = vsub.f32 %v400, %v629
        %v728 = vsub.f32 %v401, %v629
        %v729 = vsub.f32 %v402, %v630
        %v730 = vsub.f32 %v403, %v630
        %v731 = vsub.f32 %v404, %v630
        %v732 = vsub.f32 %v405, %v630
        %v733 = vsub.f32 %v406, %v631
        %v734 = vsub.f32 %v407, %v631
        %v735 = vsub.f32 %v408, %v631
        %v736 = vsub.f32 %v409, %v631
        %v737 = vsub.f32 %v410, %v632
        %v738 = vsub.f32 %v411, %v632
        %v739 = vsub.f32 %v412, %v632
        %v740 = vsub.f32 %v413, %v632
        %v741 = vsub.f32 %v414, %v633
        %v742 = vsub.f32 %v415, %v633
        %v743 = vsub.f32 %v416, %v633
        %v744 = vsub.f32 %v417, %v633
        %v745 = vsub.f32 %v418, %v634
        %v746 = vsub.f32 %v419, %v634
        %v747 = vsub.f32 %v420, %v634
        %v748 = vsub.f32 %v421, %v634
        %v749 = vsub.f32 %v422, %v635
        %v750 = vsub.f32 %v423, %v635
        %v751 = vsub.f32 %v424, %v635
        %v752 = vsub.f32 %v425, %v635
        %v753 = vsub.f32 %v426, %v636
        %v754 = vsub.f32 %v427, %v636
        %v755 = vsub.f32 %v428, %v636
        %v756 = vsub.f32 %v429, %v636
        %v757 = vsub.f32 %v430, %v637
        %v758 = vsub.f32 %v431, %v637
        %v759 = vsub.f32 %v432, %v637
        %v760 = vsub.f32 %v433, %v637
        %v761 = vsub.f32 %v434, %v638
        %v762 = vsub.f32 %v435, %v638
        %v763 = vsub.f32 %v436, %v638
        %v764 = vsub.f32 %v437, %v638
        %v765 = vsub.f32 %v438, %v639
        %v766 = vsub.f32 %v439, %v639
        %v767 = vsub.f32 %v440, %v639
        %v768 = vsub.f32 %v441, %v639
        %v769 = vsub.f32 %v442, %v640
        %v770 = vsub.f32 %v443, %v640
        %v771 = vsub.f32 %v444, %v640
        %v772 = vsub.f32 %v445, %v640
        %v773 = vmul.f32 %v721, %v706
        %v774 = vmul.f32 %v722, %v706
        %v775 = vmul.f32 %v723, %v706
        %v776 = vmul.f32 %v724, %v706
        %v777 = vmul.f32 %v725, %v707
        %v778 = vmul.f32 %v726, %v707
        %v779 = vmul.f32 %v727, %v707
        %v780 = vmul.f32 %v728, %v707
        %v781 = vmul.f32 %v729, %v708
        %v782 = vmul.f32 %v730, %v708
        %v783 = vmul.f32 %v731, %v708
        %v784 = vmul.f32 %v732, %v708
        %v785 = vmul.f32 %v733, %v709
        %v786 = vmul.f32 %v734, %v709
        %v787 = vmul.f32 %v735, %v709
        %v788 = vmul.f32 %v736, %v709
        %v789 = vmul.f32 %v737, %v710
        %v790 = vmul.f32 %v738, %v710
        %v791 = vmul.f32 %v739, %v710
        %v792 = vmul.f32 %v740, %v710
        %v793 = vmul.f32 %v741, %v711
        %v794 = vmul.f32 %v742, %v711
        %v795 = vmul.f32 %v743, %v711
        %v796 = vmul.f32 %v744, %v711
        %v797 = vmul.f32 %v745, %v712
        %v798 = vmul.f32 %v746, %v712
        %v799 = vmul.f32 %v747, %v712
        %v800 = vmul.f32 %v748, %v712
        %v801 = vmul.f32 %v749, %v713
        %v802 = vmul.f32 %v750, %v713
        %v803 = vmul.f32 %v751, %v713
        %v804 = vmul.f32 %v752, %v713
        %v805 = vmul.f32 %v753, %v714
        %v806 = vmul.f32 %v754, %v714
        %v807 = vmul.f32 %v755, %v714
        %v808 = vmul.f32 %v756, %v714
        %v809 = vmul.f32 %v757, %v715
        %v810 = vmul.f32 %v758, %v715
        %v811 = vmul.f32 %v759, %v715
        %v812 = vmul.f32 %v760, %v715
        %v813 = vmul.f32 %v761, %v716
        %v814 = vmul.f32 %v762, %v716
        %v815 = vmul.f32 %v763, %v716
        %v816 = vmul.f32 %v764, %v716
        %v817 = vmul.f32 %v765, %v717
        %v818 = vmul.f32 %v766, %v717
        %v819 = vmul.f32 %v767, %v717
        %v820 = vmul.f32 %v768, %v717
        %v821 = vmul.f32 %v769, %v718
        %v822 = vmul.f32 %v770, %v718
        %v823 = vmul.f32 %v771, %v718
        %v824 = vmul.f32 %v772, %v718
        %v826 = vlaneseq
        %v827 = vshrl.u32 %v826, 7
        %v828 = vsub.s32 0, %v827
        %v829 = vrot.slane %v719, %v828
        %v830 = vlaneseq
        %v831 = vshrl.u32 %v830, 7
        %v832 = vsub.s32 1, %v831
        %v833 = vrot.slane %v719, %v832
        %v834 = vlaneseq
        %v835 = vshrl.u32 %v834, 7
        %v836 = vsub.s32 2, %v835
        %v837 = vrot.slane %v719, %v836
        %v838 = vlaneseq
        %v839 = vshrl.u32 %v838, 7
        %v840 = vsub.s32 3, %v839
        %v841 = vrot.slane %v719, %v840
        %v846 = vmul.f32 %v773, %v829
        %v847 = vmul.f32 %v774, %v833
        %v848 = vmul.f32 %v775, %v837
        %v849 = vmul.f32 %v776, %v841
        %v850 = vmul.f32 %v777, %v829
        %v851 = vmul.f32 %v778, %v833
        %v852 = vmul.f32 %v779, %v837
        %v853 = vmul.f32 %v780, %v841
        %v854 = vmul.f32 %v781, %v829
        %v855 = vmul.f32 %v782, %v833
        %v856 = vmul.f32 %v783, %v837
        %v857 = vmul.f32 %v784, %v841
        %v858 = vmul.f32 %v785, %v829
        %v859 = vmul.f32 %v786, %v833
        %v860 = vmul.f32 %v787, %v837
        %v861 = vmul.f32 %v788, %v841
        %v862 = vmul.f32 %v789, %v829
        %v863 = vmul.f32 %v790, %v833
        %v864 = vmul.f32 %v791, %v837
        %v865 = vmul.f32 %v792, %v841
        %v866 = vmul.f32 %v793, %v829
        %v867 = vmul.f32 %v794, %v833
        %v868 = vmul.f32 %v795, %v837
        %v869 = vmul.f32 %v796, %v841
        %v870 = vmul.f32 %v797, %v829
        %v871 = vmul.f32 %v798, %v833
        %v872 = vmul.f32 %v799, %v837
        %v873 = vmul.f32 %v800, %v841
        %v874 = vmul.f32 %v801, %v829
        %v875 = vmul.f32 %v802, %v833
        %v876 = vmul.f32 %v803, %v837
        %v877 = vmul.f32 %v804, %v841
        %v878 = vmul.f32 %v805, %v829
        %v879 = vmul.f32 %v806, %v833
        %v880 = vmul.f32 %v807, %v837
        %v881 = vmul.f32 %v808, %v841
        %v882 = vmul.f32 %v809, %v829
        %v883 = vmul.f32 %v810, %v833
        %v884 = vmul.f32 %v811, %v837
        %v885 = vmul.f32 %v812, %v841
        %v886 = vmul.f32 %v813, %v829
        %v887 = vmul.f32 %v814, %v833
        %v888 = vmul.f32 %v815, %v837
        %v889 = vmul.f32 %v816, %v841
        %v890 = vmul.f32 %v817, %v829
        %v891 = vmul.f32 %v818, %v833
        %v892 = vmul.f32 %v819, %v837
        %v893 = vmul.f32 %v820, %v841
        %v894 = vmul.f32 %v821, %v829
        %v895 = vmul.f32 %v822, %v833
        %v896 = vmul.f32 %v823, %v837
        %v897 = vmul.f32 %v824, %v841
        %v899 = vlaneseq
        %v900 = vshrl.u32 %v899, 7
        %v901 = vsub.s32 0, %v900
        %v902 = vrot.slane %v720, %v901
        %v903 = vlaneseq
        %v904 = vshrl.u32 %v903, 7
        %v905 = vsub.s32 1, %v904
        %v906 = vrot.slane %v720, %v905
        %v907 = vlaneseq
        %v908 = vshrl.u32 %v907, 7
        %v909 = vsub.s32 2, %v908
        %v910 = vrot.slane %v720, %v909
        %v911 = vlaneseq
        %v912 = vshrl.u32 %v911, 7
        %v913 = vsub.s32 3, %v912
        %v914 = vrot.slane %v720, %v913
        %v919 = vadd.f32 %v846, %v902
        %v920 = vadd.f32 %v847, %v906
        %v921 = vadd.f32 %v848, %v910
        %v922 = vadd.f32 %v849, %v914
        %v923 = vadd.f32 %v850, %v902
        %v924 = vadd.f32 %v851, %v906
        %v925 = vadd.f32 %v852, %v910
        %v926 = vadd.f32 %v853, %v914
        %v927 = vadd.f32 %v854, %v902
        %v928 = vadd.f32 %v855, %v906
        %v929 = vadd.f32 %v856, %v910
        %v930 = vadd.f32 %v857, %v914
        %v931 = vadd.f32 %v858, %v902
        %v932 = vadd.f32 %v859, %v906
        %v933 = vadd.f32 %v860, %v910
        %v934 = vadd.f32 %v861, %v914
        %v935 = vadd.f32 %v862, %v902
        %v936 = vadd.f32 %v863, %v906
        %v937 = vadd.f32 %v864, %v910
        %v938 = vadd.f32 %v865, %v914
        %v939 = vadd.f32 %v866, %v902
        %v940 = vadd.f32 %v867, %v906
        %v941 = vadd.f32 %v868, %v910
        %v942 = vadd.f32 %v869, %v914
        %v943 = vadd.f32 %v870, %v902
        %v944 = vadd.f32 %v871, %v906
        %v945 = vadd.f32 %v872, %v910
        %v946 = vadd.f32 %v873, %v914
        %v947 = vadd.f32 %v874, %v902
        %v948 = vadd.f32 %v875, %v906
        %v949 = vadd.f32 %v876, %v910
        %v950 = vadd.f32 %v877, %v914
        %v951 = vadd.f32 %v878, %v902
        %v952 = vadd.f32 %v879, %v906
        %v953 = vadd.f32 %v880, %v910
        %v954 = vadd.f32 %v881, %v914
        %v955 = vadd.f32 %v882, %v902
        %v956 = vadd.f32 %v883, %v906
        %v957 = vadd.f32 %v884, %v910
        %v958 = vadd.f32 %v885, %v914
        %v959 = vadd.f32 %v886, %v902
        %v960 = vadd.f32 %v887, %v906
        %v961 = vadd.f32 %v888, %v910
        %v962 = vadd.f32 %v889, %v914
        %v963 = vadd.f32 %v890, %v902
        %v964 = vadd.f32 %v891, %v906
        %v965 = vadd.f32 %v892, %v910
        %v966 = vadd.f32 %v893, %v914
        %v967 = vadd.f32 %v894, %v902
        %v968 = vadd.f32 %v895, %v906
        %v969 = vadd.f32 %v896, %v910
        %v970 = vadd.f32 %v897, %v914
        %971 = vst [vmem:[%s271] sm:$0xff] %v919
        %972 = vst [vmem:[%s271 + $0x8] sm:$0xff] %v920
        %973 = vst [vmem:[%s271 + $0x10] sm:$0xff] %v921
        %974 = vst [vmem:[%s271 + $0x18] sm:$0xff] %v922
        %975 = vst [vmem:[%s271 + $0x20] sm:$0xff] %v923
        %976 = vst [vmem:[%s271 + $0x28] sm:$0xff] %v924
        %977 = vst [vmem:[%s271 + $0x30] sm:$0xff] %v925
        %978 = vst [vmem:[%s271 + $0x38] sm:$0xff] %v926
        %979 = vst [vmem:[%s271 + $0x40] sm:$0xff] %v927
        %980 = vst [vmem:[%s271 + $0x48] sm:$0xff] %v928
        %981 = vst [vmem:[%s271 + $0x50] sm:$0xff] %v929
        %982 = vst [vmem:[%s271 + $0x58] sm:$0xff] %v930
        %983 = vst [vmem:[%s271 + $0x60] sm:$0xff] %v931
        %984 = vst [vmem:[%s271 + $0x68] sm:$0xff] %v932
        %985 = vst [vmem:[%s271 + $0x70] sm:$0xff] %v933
        %986 = vst [vmem:[%s271 + $0x78] sm:$0xff] %v934
        %987 = vst [vmem:[%s271 + $0x80] sm:$0xff] %v935
        %988 = vst [vmem:[%s271 + $0x88] sm:$0xff] %v936
        %989 = vst [vmem:[%s271 + $0x90] sm:$0xff] %v937
        %990 = vst [vmem:[%s271 + $0x98] sm:$0xff] %v938
        %991 = vst [vmem:[%s271 + $0xa0] sm:$0xff] %v939
        %992 = vst [vmem:[%s271 + $0xa8] sm:$0xff] %v940
        %993 = vst [vmem:[%s271 + $0xb0] sm:$0xff] %v941
        %994 = vst [vmem:[%s271 + $0xb8] sm:$0xff] %v942
        %995 = vst [vmem:[%s271 + $0xc0] sm:$0xff] %v943
        %996 = vst [vmem:[%s271 + $0xc8] sm:$0xff] %v944
        %997 = vst [vmem:[%s271 + $0xd0] sm:$0xff] %v945
        %998 = vst [vmem:[%s271 + $0xd8] sm:$0xff] %v946
        %999 = vst [vmem:[%s271 + $0xe0] sm:$0xff] %v947
        %1000 = vst [vmem:[%s271 + $0xe8] sm:$0xff] %v948
        %1001 = vst [vmem:[%s271 + $0xf0] sm:$0xff] %v949
        %1002 = vst [vmem:[%s271 + $0xf8] sm:$0xff] %v950
        %1003 = vst [vmem:[%s271 + $0x100] sm:$0xff] %v951
        %1004 = vst [vmem:[%s271 + $0x108] sm:$0xff] %v952
        %1005 = vst [vmem:[%s271 + $0x110] sm:$0xff] %v953
        %1006 = vst [vmem:[%s271 + $0x118] sm:$0xff] %v954
        %1007 = vst [vmem:[%s271 + $0x120] sm:$0xff] %v955
        %1008 = vst [vmem:[%s271 + $0x128] sm:$0xff] %v956
        %1009 = vst [vmem:[%s271 + $0x130] sm:$0xff] %v957
        %1010 = vst [vmem:[%s271 + $0x138] sm:$0xff] %v958
        %1011 = vst [vmem:[%s271 + $0x140] sm:$0xff] %v959
        %1012 = vst [vmem:[%s271 + $0x148] sm:$0xff] %v960
        %1013 = vst [vmem:[%s271 + $0x150] sm:$0xff] %v961
        %1014 = vst [vmem:[%s271 + $0x158] sm:$0xff] %v962
        %1015 = vst [vmem:[%s271 + $0x160] sm:$0xff] %v963
        %1016 = vst [vmem:[%s271 + $0x168] sm:$0xff] %v964
        %1017 = vst [vmem:[%s271 + $0x170] sm:$0xff] %v965
        %1018 = vst [vmem:[%s271 + $0x178] sm:$0xff] %v966
        %1019 = vst [vmem:[%s271 + $0x180] sm:$0xff] %v967
        %1020 = vst [vmem:[%s271 + $0x188] sm:$0xff] %v968
        %1021 = vst [vmem:[%s271 + $0x190] sm:$0xff] %v969
        %1022 = vst [vmem:[%s271 + $0x198] sm:$0xff] %v970
        %s1023 = sand.u32 %s126, 1
        %s1024 = scalar_lea.sflag [#allocation4], %s1023
        %s1025 = sand.u32 %s126, 1
        %s1026 = smul.addr %s1025, 416
        %s1027 = scalar_lea.vmem [#allocation7], %s1026
        // Predicated region
        $region45: #{tpu_custom_call.1} parent=35 // pred_check
          %p1028 = pneg %p136
        $region46: #{tpu_custom_call.1} parent=35 // pred_check_branch
          %1030 = sbr.rel (%p1028) target = $region48
        $region47: #{tpu_custom_call.1} parent=35 // pred_region
          %s1031 = smul.u32 13, %s24
          %s1032 = ssub.s32 25, %s1031
          %p1033 = scmp.lt.s32.totalorder %s1032, 13
          %s1034 = scalar_select %p1033, %s1032, 13
          %s1035 = smul.u32 128, %s1034
          %s1036 = smul.u32 %s1035, 4
          %s1038 = ssub.s32 6656, %s1036
          %1039 = vsyncadd %s1024, %s1038
          %p1040 = scmp.ne.s32.totalorder 0, %s1036
          %s1041 = smul.addr %s1031, 4
          %s1042 = smul.addr %s1041, 128
          %s1043 = scalar_lea.hbm %s4, %s1042
          %s1044 = smul.u32 32, %s1034
          %s1045 = sshll.u32 %s1027, 4
          %s1046 = int_to_ptr.vmem [resolvable:$true] %s1045
          %s1047 = sshll.u32 %s1044, 4
          %1051 = dma.vmem_to_hbm [thread:$0]  (%p1040), %s1046, %s1047, %s1043, %s1024, 512, 512, 32
        $region48: #{tpu_custom_call.1} parent=35 // pred_fallthru
          _
      $region36: #{tpu_custom_call.1} parent=5 // pred_fallthru
        _
      %p1052 = scmp.le.s32.totalorder 2, %s19
      // Predicated region
      $region49: #{tpu_custom_call.1} parent=5 // pred_check
        %p1053 = pneg %p1052
      $region50: #{tpu_custom_call.1} parent=5 // pred_check_branch
        %1055 = sbr.rel (%p1053) target = $region52
      $region51: #{tpu_custom_call.1} parent=5 // pred_region
        %s1056 = ssub.s32 %s19, 2
        // Predicated region
        $region53: #{tpu_custom_call.1} parent=51 // pred_check
          %p1057 = pneg %p142
        $region54: #{tpu_custom_call.1} parent=51 // pred_check_branch
          %1059 = sbr.rel (%p1057) target = $region56
        $region55: #{tpu_custom_call.1} parent=51 // pred_region
          %s1060 = sand.u32 %s127, 1
          %s1061 = scalar_lea.sflag [#allocation4], %s1060
          %s1062 = sand.u32 %s127, 1
          %s1063 = smul.addr %s1062, 416
          %s1064 = scalar_lea.vmem [#allocation7], %s1063
          %1065 = dma.done %s1061, 6656
        $region56: #{tpu_custom_call.1} parent=51 // pred_fallthru
          _
      $region52: #{tpu_custom_call.1} parent=5 // pred_fallthru
        _
    $region6: #{tpu_custom_call.1} parent=1 // loop_footer
      %s23 = sadd.s32 1, %s19
    $region7: #{tpu_custom_call.1} parent=1 // loop_footer_branch
      %18 = sbr.rel target = $region3
    $region8: #{tpu_custom_call.1} parent=1 // loop_exit
      _
    %1066 = vsyncpa [#allocation3], 1
    %s1067 = scalar_lea.sflag [#allocation3], 1
    %1068 = vsyncpa %s1067, 1
    %1069 = vsyncpa [#allocation6], 1
    %s1070 = scalar_lea.sflag [#allocation6], 1
    %1071 = vsyncpa %s1070, 1
    %1072 = vsyncpa [#allocation4], 1
    %s1073 = scalar_lea.sflag [#allocation4], 1
    %1074 = vsyncpa %s1073, 1

</llo_original>
